<compile_context>
chip_gen: v7x
topology: tpu7x:2x2x1
jax: 0.10.0
libtpu: 0.0.40
codegen_flags: <defaults>
</compile_context>

<pallas_src>
import functools

import jax
import jax.numpy as jnp
from jax import lax
from jax.experimental import pallas as pl
from jax.experimental.pallas import tpu as pltpu

_EPS = 1e-8  # torch.nn.CosineSimilarity default eps


def _round_up(x, m):
    return ((x + m - 1) // m) * m


def _pseudo_label_kernel(proto_ref, ft_ref, out_ref, dots_ref, *,
                         num_classes, d_total, d_tile, mask_d_tail):
    """Grid = (Bt_tiles, D_tiles); D is the (innermost) reduction axis."""
    k = pl.program_id(1)

    @pl.when(k == 0)
    def _init():
        dots_ref[...] = jnp.zeros_like(dots_ref)

    ft = ft_ref[...]                       # (b_tile, d_tile) feature tile
    if mask_d_tail:
        # Zero the D tail of the (possibly OOB/garbage) last reduction block;
        # all-true for full blocks.  Needed so uninitialised tail bits (which
        # may be NaN) never reach the matmul.
        lane = lax.broadcasted_iota(jnp.int32, ft.shape, 1)
        ft = jnp.where(lane < (d_total - k * d_tile), ft, jnp.zeros_like(ft))

    # (C, d_tile) . (b_tile, d_tile)^T -> (C, b_tile); f32 accumulation.
    dots_ref[...] += lax.dot_general(
        proto_ref[...], ft,
        dimension_numbers=(((1,), (1,)), ((), ())),
        preferred_element_type=jnp.float32)

    @pl.when(k == pl.num_programs(1) - 1)
    def _finish():
        # proto_n is pre-normalised, so dots == cosine up to the positive
        # per-sample ||ft|| factor (argmin-invariant).
        cos = dots_ref[...]                                   # (C, b_tile)
        c_dim, b_dim = cos.shape
        min_val = jnp.min(cos, axis=0, keepdims=True)         # (1, b_tile)
        idx = lax.broadcasted_iota(jnp.int32, (c_dim, b_dim), 0)
        cand = jnp.where(cos <= min_val, idx, num_classes)    # first index on ties
        out_ref[...] = jnp.min(cand, axis=0, keepdims=True).astype(jnp.int32)


def prototype_pseudo_labeling(fs, ys, ft, *, num_classes=3, gamma=0.1):
    """JAX/Pallas equivalent of PrototypePseudoLabeling.forward (first call)."""
    assert fs.shape[0] == ft.shape[0], (
        "Batch sizes of source and target features are not the same")
    Bs, Bt = fs.shape[0], ft.shape[0]
    C = num_classes

    feat_dtype = ft.dtype
    if not jnp.issubdtype(feat_dtype, jnp.floating):
        feat_dtype = jnp.float32
    fs2 = fs.reshape(Bs, -1)                      # (Bs, D)  (no copy/pad)
    ft2 = ft.reshape(Bt, -1).astype(feat_dtype)   # (Bt, D)  upstream dtype kept
    D = fs2.shape[1]

    # ---- hoisted prototype computation (tiny C x D; plain JAX, f32) --------
    ys_i = ys.reshape(-1).astype(jnp.int32)
    classes = jnp.arange(C, dtype=jnp.int32)
    onehot = (ys_i[None, :] == classes[:, None]).astype(jnp.float32)   # (C, Bs)
    counts = jnp.sum(onehot, axis=1, keepdims=True)                    # (C, 1)
    inv_counts = jnp.where(counts > 0.0, 1.0 / jnp.maximum(counts, 1.0), 0.0)
    proto = (onehot @ fs2.astype(jnp.float32)) * inv_counts            # class means
    proto = (1.0 - gamma) * proto          # EMA with zero-initialised prototypes
    # TODO(synk): persistent EMA: proto = gamma * prev_proto + (1-gamma) * proto
    p_norm = jnp.sqrt(jnp.sum(proto * proto, axis=1, keepdims=True))   # (C, 1)
    proto_n = proto / jnp.maximum(p_norm, _EPS)      # fold cosine denom into proto

    # ---- tile selection -----------------------------------------------------
    d_tile = min(_round_up(D, 128), 2048)
    grid_k = pl.cdiv(D, d_tile)
    mask_d_tail = (D % d_tile) != 0

    if Bt > 128:
        # >= 2 target tiles so both v7x TensorCores get work; lane-dense out.
        b_tile = min(512, _round_up(pl.cdiv(Bt, 2), 128))
    else:
        b_tile = _round_up(Bt, 8)
    grid_i = pl.cdiv(Bt, b_tile)
    out_lanes = grid_i * b_tile            # padded label row; sliced to Bt below

    # Only the tiny prototype matrix gets zero-padded (so its D tail is exact).
    proto_p = jnp.pad(proto_n, ((0, 0), (0, grid_k * d_tile - D))).astype(feat_dtype)

    fbytes = jnp.dtype(feat_dtype).itemsize
    cost = pl.CostEstimate(
        flops=2 * C * Bt * D,
        transcendentals=0,
        bytes_accessed=Bt * D * fbytes + grid_i * C * grid_k * d_tile * fbytes
        + out_lanes * 4)

    out = pl.pallas_call(
        functools.partial(_pseudo_label_kernel,
                          num_classes=C, d_total=D, d_tile=d_tile,
                          mask_d_tail=mask_d_tail),
        out_shape=jax.ShapeDtypeStruct((1, out_lanes), jnp.int32),
        grid_spec=pltpu.PrefetchScalarGridSpec(
            num_scalar_prefetch=0,
            grid=(grid_i, grid_k),
            in_specs=[
                pl.BlockSpec((C, d_tile), lambda i, k: (0, k)),        # proto_n
                pl.BlockSpec((b_tile, d_tile), lambda i, k: (i, k)),   # ft
            ],
            out_specs=pl.BlockSpec((1, b_tile), lambda i, k: (0, i)),
            scratch_shapes=[
                pltpu.VMEM((C, b_tile), jnp.float32),   # dots accumulator
            ]),
        compiler_params=pltpu.CompilerParams(
            dimension_semantics=("parallel", "arbitrary"),
            vmem_limit_bytes=32 * 1024 * 1024),
        cost_estimate=cost,
    )(proto_p, ft2)

    return out[0, :Bt]   # (Bt,) int32 pseudo labels


def _reference(fs, ys, ft, *, num_classes=3, gamma=0.1):
    """Pure-JAX reference mirroring the PyTorch module (first forward call)."""
    B = fs.shape[0]
    fs2 = fs.reshape(B, -1).astype(jnp.float32)
    ft2 = ft.reshape(B, -1).astype(jnp.float32)
    protos = []
    for c in range(num_classes):
        mask = (ys == c).astype(jnp.float32)
        cnt = jnp.sum(mask)
        mean = jnp.where(cnt > 0,
                         jnp.sum(fs2 * mask[:, None], axis=0)
                         / jnp.maximum(cnt, 1.0), 0.0)
        protos.append(mean)
    proto = (1.0 - gamma) * jnp.stack(protos, axis=0)               # (C, D)
    dots = ft2 @ proto.T                                            # (B, C)
    denom = jnp.maximum(jnp.linalg.norm(ft2, axis=1, keepdims=True)
                        * jnp.linalg.norm(proto, axis=1)[None, :], _EPS)
    cos = dots / denom
    return jnp.argmin(cos, axis=1).astype(jnp.int32)


if __name__ == "__main__":
    key = jax.random.PRNGKey(0)
    k1, k2, k3 = jax.random.split(key, 3)

    B, P, E, C = 10, 4, 30, 3        # batch, n_patches, embed_dim, num_classes
    fs = jax.random.normal(k1, (B, P, E), dtype=jnp.float32)   # source features
    ys = jax.random.randint(k2, (B,), 0, C, dtype=jnp.int32)   # source labels
    ft = jax.random.normal(k3, (B, P, E), dtype=jnp.float32)   # target features

    yt_ps = jax.block_until_ready(
        prototype_pseudo_labeling(fs, ys, ft, num_classes=C, gamma=0.1))
    ref = jax.block_until_ready(
        _reference(fs, ys, ft, num_classes=C, gamma=0.1))

    assert yt_ps.shape == (B,), yt_ps.shape
    assert bool(jnp.all(yt_ps == ref)), (yt_ps, ref)

    print("KERNEL_OK")
</pallas_src>

<mosaic_0001>
module attributes {stable_mosaic.version = 11 : i64} {
  func.func @_pseudo_label_kernel(%arg0: i32, %arg1: i32, %arg2: memref<3x128xf32, #tpu.memory_space<vmem>>, %arg3: memref<16x128xf32, #tpu.memory_space<vmem>>, %arg4: memref<1x16xi32, #tpu.memory_space<vmem>>, %arg5: memref<3x16xf32, #tpu.memory_space<vmem>>) attributes {dimension_semantics = [#tpu.dimension_semantics<parallel>, #tpu.dimension_semantics<arbitrary>], iteration_bounds = array<i64: 1, 1>, scalar_prefetch = 0 : i64, scratch_operands = 1 : i64, tpu.core_type = #tpu.core_type<tc>, window_params = [{transform_indices = @transform_0, window_bounds = array<i64: 3, 128>}, {transform_indices = @transform_1, window_bounds = array<i64: 16, 128>}, {transform_indices = @transform_2, window_bounds = array<i64: 1, 16>}]} {
    %c0_i32 = arith.constant 0 : i32
    %0 = arith.cmpi eq, %arg1, %c0_i32 : i32
    %1 = arith.extui %0 : i1 to i32
    %c0_i32_0 = arith.constant 0 : i32
    %2 = arith.cmpi ne, %1, %c0_i32_0 : i32
    scf.if %2 {
      %cst_11 = arith.constant 0.000000e+00 : f32
      %19 = vector.broadcast %cst_11 : f32 to vector<3x16xf32>
      %c0_12 = arith.constant 0 : index
      %c0_13 = arith.constant 0 : index
      %20 = vector.load %arg5[%c0_12, %c0_13] : memref<3x16xf32, #tpu.memory_space<vmem>>, vector<3x16xf32>
      tpu.vector_store %arg5[%c0_12, %c0_13], %19 {strides = array<i32>} : memref<3x16xf32, #tpu.memory_space<vmem>>, vector<3x16xf32>,
    } else {
    }
    %c0 = arith.constant 0 : index
    %c0_1 = arith.constant 0 : index
    %3 = vector.load %arg3[%c0, %c0_1] : memref<16x128xf32, #tpu.memory_space<vmem>>, vector<16x128xf32>
    %4 = tpu.iota {dimensions = array<i32: 1>} : vector<16x128xi32>
    %c128_i32 = arith.constant 128 : i32
    %5 = arith.muli %arg1, %c128_i32 : i32
    %c120_i32 = arith.constant 120 : i32
    %6 = arith.subi %c120_i32, %5 : i32
    %7 = vector.broadcast %6 : i32 to vector<16x128xi32>
    %8 = arith.cmpi slt, %4, %7 : vector<16x128xi32>
    %cst = arith.constant 0.000000e+00 : f32
    %9 = vector.broadcast %cst : f32 to vector<16x128xf32>
    %10 = arith.select %8, %3, %9 : vector<16x128xi1>, vector<16x128xf32>
    %c0_2 = arith.constant 0 : index
    %c0_3 = arith.constant 0 : index
    %11 = vector.load %arg5[%c0_2, %c0_3] : memref<3x16xf32, #tpu.memory_space<vmem>>, vector<3x16xf32>
    %c0_4 = arith.constant 0 : index
    %c0_5 = arith.constant 0 : index
    %12 = vector.load %arg2[%c0_4, %c0_5] : memref<3x128xf32, #tpu.memory_space<vmem>>, vector<3x128xf32>
    %cst_6 = arith.constant dense<0.000000e+00> : vector<3x16xf32>
    %13 = tpu.matmul %12, %10, %cst_6 {dimension_numbers = #tpu.dot_dimension_numbers<[1], [1], [0], [0], [0, 0, 1, 0], [], []>} : vector<3x128xf32>, vector<16x128xf32>, vector<3x16xf32> -> vector<3x16xf32>
    %14 = arith.addf %11, %13 : vector<3x16xf32>
    %c0_7 = arith.constant 0 : index
    %c0_8 = arith.constant 0 : index
    %15 = vector.load %arg5[%c0_7, %c0_8] : memref<3x16xf32, #tpu.memory_space<vmem>>, vector<3x16xf32>
    tpu.vector_store %arg5[%c0_7, %c0_8], %14 {strides = array<i32>} : memref<3x16xf32, #tpu.memory_space<vmem>>, vector<3x16xf32>,
    %c0_i32_9 = arith.constant 0 : i32
    %16 = arith.cmpi eq, %arg1, %c0_i32_9 : i32
    %17 = arith.extui %16 : i1 to i32
    %c0_i32_10 = arith.constant 0 : i32
    %18 = arith.cmpi ne, %17, %c0_i32_10 : i32
    scf.if %18 {
      %c0_11 = arith.constant 0 : index
      %c0_12 = arith.constant 0 : index
      %19 = vector.load %arg5[%c0_11, %c0_12] : memref<3x16xf32, #tpu.memory_space<vmem>>, vector<3x16xf32>
      %cst_13 = arith.constant dense<0x7F800000> : vector<16xf32>
      %20 = vector.multi_reduction <minimumf>, %19, %cst_13 [0] : vector<3x16xf32> to vector<16xf32>
      %21 = vector.shape_cast %20 : vector<16xf32> to vector<1x16xf32>
      %22 = tpu.iota {dimensions = array<i32: 0>} : vector<3x16xi32>
      %23 = vector.broadcast %21 : vector<1x16xf32> to vector<3x16xf32>
      %24 = arith.cmpf ole, %19, %23 : vector<3x16xf32>
      %c3_i32 = arith.constant 3 : i32
      %25 = vector.broadcast %c3_i32 : i32 to vector<3x16xi32>
      %26 = arith.select %24, %22, %25 : vector<3x16xi1>, vector<3x16xi32>
      %cst_14 = arith.constant dense<2147483647> : vector<16xi32>
      %27 = vector.multi_reduction <minsi>, %26, %cst_14 [0] : vector<3x16xi32> to vector<16xi32>
      %28 = vector.shape_cast %27 : vector<16xi32> to vector<1x16xi32>
      %c0_15 = arith.constant 0 : index
      %c0_16 = arith.constant 0 : index
      %29 = vector.load %arg4[%c0_15, %c0_16] : memref<1x16xi32, #tpu.memory_space<vmem>>, vector<1x16xi32>
      tpu.vector_store %arg4[%c0_15, %c0_16], %28 {strides = array<i32>} : memref<1x16xi32, #tpu.memory_space<vmem>>, vector<1x16xi32>,
    } else {
    }
    return
  }
  func.func @transform_0(%arg0: i32, %arg1: i32) -> (i32, i32) {
    %c0_i32 = arith.constant 0 : i32
    %c0_i32_0 = arith.constant 0 : i32
    return %c0_i32, %arg1 : i32, i32
  }
  func.func @transform_1(%arg0: i32, %arg1: i32) -> (i32, i32) {
    %c0_i32 = arith.constant 0 : i32
    return %arg0, %arg1 : i32, i32
  }
  func.func @transform_2(%arg0: i32, %arg1: i32) -> (i32, i32) {
    %c0_i32 = arith.constant 0 : i32
    %c0_i32_0 = arith.constant 0 : i32
    return %c0_i32, %arg0 : i32, i32
  }
}

</mosaic_0001>

<llo_original>
// kernel: tpu_custom_call.1
$region0: #{tpu_custom_call.1}
  #allocation0 [shape = 'u32[]', space=smem, size = 0x4, offset = 0x4, fixed_abs, tag = 'smem constant byte address 0x4 - core index']
  #allocation1 [shape = 'u32[144,128]{1,0:T(1,128)}', space=vmem, size = 0x12000, scoped, tag = 'internal scratch']
  #allocation2 [shape = 'f32[3,16]{1,0:T(4,128)}', space=vmem, size = 0x800, scoped, tag = 'scratch operand']
  %s0 = inlined_call_operand.hbm [shape: f32[3,128], index: 0, kind: input, shape index: {}]
  %s1 = inlined_call_operand.hbm [shape: f32[10,120], index: 1, kind: input, shape index: {}]
  %s2 = inlined_call_operand.hbm [shape: s32[1,16], index: 2, kind: output, shape index: {}]
  %s3 = sld [smem:[#allocation0]]
  $region34: #{tpu_custom_call.1} parent=0
    _
  %s5 = ssub.s32 1, %s3
  %s6 = scalar_select 0, %s5, %s3
  $region1: #{tpu_custom_call.1} parent=0
    #allocation3 [shape = 'u8[2048]{0}', space=vmem, size = 0x800, scoped, tag = 'input window, operand 0, single buffered']
    #allocation4 [shape = 's32[1]{0}', space=sflag, size = 0x4, scoped, tag = 'scoped memory for tpu_custom_call.1']
    #allocation5 [shape = 's32[1]{0}', space=sflag, size = 0x4, scoped, tag = 'scoped memory for tpu_custom_call.1']
    #allocation6 [shape = 'u8[8192]{0}', space=vmem, size = 0x2000, scoped, tag = 'input window, operand 1, single buffered']
    #allocation7 [shape = 's32[1]{0}', space=sflag, size = 0x4, scoped, tag = 'scoped memory for tpu_custom_call.1']
    #allocation8 [shape = 'u8[512]{0}', space=vmem, size = 0x400, scoped, tag = 'output window, operand 0, single buffered']
    %7 = vsyncpa [#allocation4], 0
    %8 = vsyncpa [#allocation7], 0
    %9 = vsyncpa [#allocation5], 0
    // Predicated region
    $region2: #{tpu_custom_call.1} parent=1 // pred_check
      _
    $region3: #{tpu_custom_call.1} parent=1 // pred_check_branch
      %11 = sbr.rel (0) target = $region5
    $region4: #{tpu_custom_call.1} parent=1 // pred_region
      %s13 = ssub.s32 64, 64
      %14 = vsyncadd [#allocation4], %s13
      %s16 = sshll.u32 [#allocation3], 4
      %s17 = int_to_ptr.vmem [resolvable:$true] %s16
      %19 = dma.hbm_to_vmem [thread:$0]  %s0, 64, %s17, [#allocation4]
    $region5: #{tpu_custom_call.1} parent=1 // pred_fallthru
      _
    // Predicated region
    $region6: #{tpu_custom_call.1} parent=1 // pred_check
      _
    $region7: #{tpu_custom_call.1} parent=1 // pred_check_branch
      %21 = sbr.rel (0) target = $region9
    $region8: #{tpu_custom_call.1} parent=1 // pred_region
      %s23 = ssub.s32 256, 256
      %24 = vsyncadd [#allocation7], %s23
      %s25 = sshll.u32 [#allocation6], 4
      %s26 = int_to_ptr.vmem [resolvable:$true] %s25
      %31 = dma.hbm_to_vmem [thread:$0]  %s1, 256, %s26, [#allocation7], 128, 128, 8
    $region9: #{tpu_custom_call.1} parent=1 // pred_fallthru
      _
    // Predicated region
    $region10: #{tpu_custom_call.1} parent=1 // pred_check
      _
    $region11: #{tpu_custom_call.1} parent=1 // pred_check_branch
      %33 = sbr.rel (0) target = $region13
    $region12: #{tpu_custom_call.1} parent=1 // pred_region
      %34 = dma.done [#allocation4], 64
    $region13: #{tpu_custom_call.1} parent=1 // pred_fallthru
      _
    // Predicated region
    $region14: #{tpu_custom_call.1} parent=1 // pred_check
      _
    $region15: #{tpu_custom_call.1} parent=1 // pred_check_branch
      %36 = sbr.rel (0) target = $region17
    $region16: #{tpu_custom_call.1} parent=1 // pred_region
      %37 = dma.done [#allocation7], 256
    $region17: #{tpu_custom_call.1} parent=1 // pred_fallthru
      _
    %p38 = scmp.eq.s32.totalorder 0, 0
    // Predicated region
    $region18: #{tpu_custom_call.1} parent=1 // pred_check
      %p39 = pneg %p38
    $region19: #{tpu_custom_call.1} parent=1 // pred_check_branch
      %41 = sbr.rel (%p39) target = $region21
    $region20: #{tpu_custom_call.1} parent=1 // pred_region
      %vm42 = vcmask 124928
      %43 = vst.msk [vmem:[#allocation2] sm:$0x7] %vm42, 0.0
    $region21: #{tpu_custom_call.1} parent=1 // pred_fallthru
      _
    %v44 = vld [vmem:[#allocation6] sm:$0xff]
    %v45 = vld [vmem:[#allocation6 + $0x8] sm:$0xff]
    %v46 = vlaneseq
    %v47 = vand.u32 %v46, 127
    %s48 = smul.u32 0, 128
    %s49 = ssub.s32 120, %s48
    %v50 = vstv %s49
    %vm51 = vcmp.lt.s32.totalorder %v47, %v50
    %v52 = vsel %vm51, %v44, 0.0
    %v53 = vsel %vm51, %v45, 0.0
    %v54 = vld [vmem:[#allocation2] sm:$0x7]
    %v55 = vld [vmem:[#allocation3] sm:$0x7]
    %56 = vmatprep.subr.mxu0 0.0
    %57 = vmatpush1.xpose.msra.mxu0 %v52
    %58 = vmatprep.subr.mxu0 0.0
    %59 = vmatpush1.xpose.msra.mxu0 %v53
    %60 = vmatprep.subr.mxu0 0.0
    %61 = vmatpush1.xpose.msra.mxu0 0.0
    %62 = vmatprep.subr.mxu0 0.0
    %63 = vmatpush1.xpose.msra.mxu0 0.0
    %64 = vmatprep.subr.mxu0 0.0
    %65 = vmatpush1.xpose.msra.mxu0 0.0
    %66 = vmatprep.subr.mxu0 0.0
    %67 = vmatpush1.xpose.msra.mxu0 0.0
    %68 = vmatprep.subr.mxu0 0.0
    %69 = vmatpush1.xpose.msra.mxu0 0.0
    %70 = vmatprep.subr.mxu0 0.0
    %71 = vmatpush1.xpose.msra.mxu0 0.0
    %72 = vmatprep.subr.mxu0 0.0
    %73 = vmatpush1.xpose.msra.mxu0 0.0
    %74 = vmatprep.subr.mxu0 0.0
    %75 = vmatpush1.xpose.msra.mxu0 0.0
    %76 = vmatprep.subr.mxu0 0.0
    %77 = vmatpush1.xpose.msra.mxu0 0.0
    %78 = vmatprep.subr.mxu0 0.0
    %79 = vmatpush1.xpose.msra.mxu0 0.0
    %80 = vmatprep.subr.mxu0 0.0
    %81 = vmatpush1.xpose.msra.mxu0 0.0
    %82 = vmatprep.subr.mxu0 0.0
    %83 = vmatpush1.xpose.msra.mxu0 0.0
    %84 = vmatprep.subr.mxu0 0.0
    %85 = vmatpush1.xpose.msra.mxu0 0.0
    %86 = vmatprep.subr.mxu0 0.0
    %87 = vmatpush1.xpose.msra.mxu0 0.0
    %88 = vmatprep.subr.mxu0 0.0
    %89 = vmatpush1.xpose.msra.mxu0 0.0
    %90 = vmatprep.subr.mxu0 0.0
    %91 = vmatpush1.xpose.msra.mxu0 0.0
    %92 = vmatprep.subr.mxu0 0.0
    %93 = vmatpush1.xpose.msra.mxu0 0.0
    %94 = vmatprep.subr.mxu0 0.0
    %95 = vmatpush1.xpose.msra.mxu0 0.0
    %96 = vmatprep.subr.mxu0 0.0
    %97 = vmatpush1.xpose.msra.mxu0 0.0
    %98 = vmatprep.subr.mxu0 0.0
    %99 = vmatpush1.xpose.msra.mxu0 0.0
    %100 = vmatprep.subr.mxu0 0.0
    %101 = vmatpush1.xpose.msra.mxu0 0.0
    %102 = vmatprep.subr.mxu0 0.0
    %103 = vmatpush1.xpose.msra.mxu0 0.0
    %104 = vmatprep.subr.mxu0 0.0
    %105 = vmatpush1.xpose.msra.mxu0 0.0
    %106 = vmatprep.subr.mxu0 0.0
    %107 = vmatpush1.xpose.msra.mxu0 0.0
    %108 = vmatprep.subr.mxu0 0.0
    %109 = vmatpush1.xpose.msra.mxu0 0.0
    %110 = vmatprep.subr.mxu0 0.0
    %111 = vmatpush1.xpose.msra.mxu0 0.0
    %112 = vmatprep.subr.mxu0 0.0
    %113 = vmatpush1.xpose.msra.mxu0 0.0
    %114 = vmatprep.subr.mxu0 0.0
    %115 = vmatpush1.xpose.msra.mxu0 0.0
    %116 = vmatprep.subr.mxu0 0.0
    %117 = vmatpush1.xpose.msra.mxu0 0.0
    %118 = vmatprep.subr.mxu0 0.0
    %119 = vmatpush1.xpose.msra.mxu0 0.0
    %120 = vmatprep.mubr.f32.mxu0 0.0
    %121 = vmatmul.mubr.f32.gmra.mrb[0].mxu0 %v55
    %v122 = vpop.f32.mrb[0].mxu0
    %v123 = vadd.f32 0.0, %v122
    %v124 = vpop.f32.mrb[0].mxu0
    %125 = vdwg.mxu0
    %v126 = vadd.f32 %v54, %v123
    %vm127 = vcmask 124928
    %128 = vst.msk [vmem:[#allocation2] sm:$0x7] %vm127, %v126
    // Predicated region
    $region22: #{tpu_custom_call.1} parent=1 // pred_check
      %p129 = pneg %p38
    $region23: #{tpu_custom_call.1} parent=1 // pred_check_branch
      %131 = sbr.rel (%p129) target = $region25
    $region24: #{tpu_custom_call.1} parent=1 // pred_region
      %v132 = vld [vmem:[#allocation2] sm:$0x7]
      %v133 = vsel %vm127, %v132, inf
      %v134 = vrot.slane %v133, 4
      %v135 = vmin.f32 %v133, %v134
      %v136 = vrot.slane %v135, 2
      %v137 = vmin.f32 %v135, %v136
      %v138 = vrot.slane %v137, 1
      %v139 = vmin.f32 %v137, %v138
      %v140 = vlaneseq
      %v141 = vshrl.u32 %v140, 7
      %vm142 = vcmp.le.f32.partialorder %v132, %v139
      %v143 = vsel %vm142, %v141, 3
      %v144 = vsel %vm127, %v143, 2147483647
      %v145 = vrot.slane %v144, 4
      %vm146 = vcmp.lt.s32.totalorder %v144, %v145
      %v147 = vsel %vm146, %v144, %v145
      %v148 = vrot.slane %v147, 2
      %vm149 = vcmp.lt.s32.totalorder %v147, %v148
      %v150 = vsel %vm149, %v147, %v148
      %v151 = vrot.slane %v150, 1
      %vm152 = vcmp.lt.s32.totalorder %v150, %v151
      %v153 = vsel %vm152, %v150, %v151
      %vm154 = vcmask 122880
      %155 = vst.msk [vmem:[#allocation8] sm:$0x1] %vm154, %v153
    $region25: #{tpu_custom_call.1} parent=1 // pred_fallthru
      _
    // Predicated region
    $region26: #{tpu_custom_call.1} parent=1 // pred_check
      _
    $region27: #{tpu_custom_call.1} parent=1 // pred_check_branch
      %157 = sbr.rel (0) target = $region29
    $region28: #{tpu_custom_call.1} parent=1 // pred_region
      %s159 = ssub.s32 16, 16
      %160 = vsyncadd [#allocation5], %s159
      %s162 = sshll.u32 [#allocation8], 4
      %s163 = int_to_ptr.vmem [resolvable:$true] %s162
      %165 = dma.vmem_to_hbm [thread:$0]  %s163, 16, %s2, [#allocation5]
    $region29: #{tpu_custom_call.1} parent=1 // pred_fallthru
      _
    // Predicated region
    $region30: #{tpu_custom_call.1} parent=1 // pred_check
      _
    $region31: #{tpu_custom_call.1} parent=1 // pred_check_branch
      %167 = sbr.rel (0) target = $region33
    $region32: #{tpu_custom_call.1} parent=1 // pred_region
      %168 = dma.done [#allocation5], 16
    $region33: #{tpu_custom_call.1} parent=1 // pred_fallthru
      _
    %169 = vsyncpa [#allocation4], 1
    %170 = vsyncpa [#allocation7], 1
    %171 = vsyncpa [#allocation5], 1

</llo_original>
